<compile_context>
chip_gen: v7x
topology: tpu7x:2x2x1
jax: 0.10.0
libtpu: 0.0.40
codegen_flags: <defaults>
</compile_context>

<pallas_src>
import jax
import jax.numpy as jnp
from jax.experimental import pallas as pl
from jax.experimental.pallas import tpu as pltpu


def _pooler_kernel(x_ref, w_ref, b_ref, o_ref):
    # x_ref: (tb, H)  bf16 first-token activations
    # w_ref: (H, tn)  bf16 weight tile, (in, out) layout
    # b_ref: (1, tn)  f32 bias tile
    # o_ref: (tb, tn) output tile
    acc = jnp.dot(x_ref[...], w_ref[...],
                  preferred_element_type=jnp.float32)   # MXU, f32 accumulate
    acc = acc + b_ref[...]                              # f32 epilogue
    o_ref[...] = jnp.tanh(acc).astype(o_ref.dtype)      # EUP tanh, single store


def prepare_pooler_params(weight, bias):
    """One-time weight prep (model load): PyTorch (out,in) -> (in,out) bf16."""
    w = jnp.asarray(weight).T.astype(jnp.bfloat16)          # (H_in, H_out) bf16
    b = jnp.asarray(bias).reshape(1, -1).astype(jnp.float32)  # (1, H_out) f32
    return w, b


@jax.jit
def pooler_forward(hidden_states, w_prepared, b_prepared):
    """hidden_states: (B, S, H); w_prepared: (H, H) bf16; b_prepared: (1, H) f32."""
    B, S, H = hidden_states.shape
    out_dtype = hidden_states.dtype

    # First-token slice + bf16 cast (fused by XLA, B*H bytes -- negligible).
    x0 = hidden_states[:, 0, :].astype(jnp.bfloat16)         # (B, H)

    # Tile sizes: batch tile up to 256 (full dim when small -> legal block),
    # output-feature tile 512 lanes (128-aligned) or full H when not aligned.
    tb = B if B <= 256 else 256
    tn = min(512, H) if H % 128 == 0 else H
    grid = (pl.cdiv(B, tb), pl.cdiv(H, tn))

    itemsize_out = jnp.dtype(out_dtype).itemsize
    cost = pl.CostEstimate(
        flops=2 * B * H * H,
        transcendentals=B * H,
        bytes_accessed=H * H * 2 + B * H * 2 + B * H * itemsize_out + H * 4,
    )

    return pl.pallas_call(
        _pooler_kernel,
        out_shape=jax.ShapeDtypeStruct((B, H), out_dtype),
        grid=grid,
        in_specs=[
            pl.BlockSpec((tb, H), lambda i, j: (i, 0)),    # activations: batch-tiled
            pl.BlockSpec((H, tn), lambda i, j: (0, j)),    # weight: out-feature tiles
            pl.BlockSpec((1, tn), lambda i, j: (0, j)),    # bias tile
        ],
        out_specs=pl.BlockSpec((tb, tn), lambda i, j: (i, j)),
        compiler_params=pltpu.CompilerParams(
            dimension_semantics=("parallel", "parallel")),  # both axes megacore-shardable
        cost_estimate=cost,
    )(x0, w_prepared, b_prepared)


if __name__ == "__main__":
    key = jax.random.PRNGKey(0)
    k_x, k_w, k_b = jax.random.split(key, 3)

    # Small shapes consistent with the module: batch=2, seq=8, hidden=128.
    B, S, H = 2, 8, 128
    hidden_states = jax.random.normal(k_x, (B, S, H), jnp.float32)
    weight = jax.random.normal(k_w, (H, H), jnp.float32) * 0.02   # PyTorch (out, in)
    bias = jax.random.normal(k_b, (H,), jnp.float32) * 0.01

    # One-time weight prep (model load time), then the fused forward.
    w_prep, b_prep = prepare_pooler_params(weight, bias)
    out = pooler_forward(hidden_states, w_prep, b_prep)
    out = jax.block_until_ready(out)

    assert out.shape == (B, H), out.shape
    assert out.dtype == jnp.float32

    # Check forward-pass semantics against a pure-JAX f32 reference.
    # (bf16 weight stream + f32 accumulation: expected |err| ~1e-3 at H=128.)
    ref = jnp.tanh(hidden_states[:, 0] @ weight.T + bias)
    assert jnp.allclose(out, ref, atol=2e-2, rtol=2e-2), float(
        jnp.max(jnp.abs(out - ref)))

    print("KERNEL_OK")
</pallas_src>

<mosaic_0001>
module attributes {stable_mosaic.version = 11 : i64} {
  func.func @_pooler_kernel(%arg0: i32, %arg1: i32, %arg2: memref<2x128xbf16, #tpu.memory_space<vmem>>, %arg3: memref<128x128xbf16, #tpu.memory_space<vmem>>, %arg4: memref<1x128xf32, #tpu.memory_space<vmem>>, %arg5: memref<2x128xf32, #tpu.memory_space<vmem>>) attributes {dimension_semantics = [#tpu.dimension_semantics<parallel>, #tpu.dimension_semantics<parallel>], iteration_bounds = array<i64: 1, 1>, scalar_prefetch = 0 : i64, scratch_operands = 0 : i64, tpu.core_type = #tpu.core_type<tc>, window_params = [{transform_indices = @transform_0, window_bounds = array<i64: 2, 128>}, {transform_indices = @transform_1, window_bounds = array<i64: 128, 128>}, {transform_indices = @transform_2, window_bounds = array<i64: 1, 128>}, {transform_indices = @transform_3, window_bounds = array<i64: 2, 128>}]} {
    %c0 = arith.constant 0 : index
    %c0_0 = arith.constant 0 : index
    %0 = vector.load %arg2[%c0, %c0_0] : memref<2x128xbf16, #tpu.memory_space<vmem>>, vector<2x128xbf16>
    %c0_1 = arith.constant 0 : index
    %c0_2 = arith.constant 0 : index
    %1 = vector.load %arg3[%c0_1, %c0_2] : memref<128x128xbf16, #tpu.memory_space<vmem>>, vector<128x128xbf16>
    %cst = arith.constant dense<0.000000e+00> : vector<2x128xf32>
    %2 = tpu.matmul %0, %1, %cst {dimension_numbers = #tpu.dot_dimension_numbers<[1], [0], [0], [1], [0, 0, 1, 1], [], []>} : vector<2x128xbf16>, vector<128x128xbf16>, vector<2x128xf32> -> vector<2x128xf32>
    %c0_3 = arith.constant 0 : index
    %c0_4 = arith.constant 0 : index
    %3 = vector.load %arg4[%c0_3, %c0_4] : memref<1x128xf32, #tpu.memory_space<vmem>>, vector<1x128xf32>
    %4 = vector.broadcast %3 : vector<1x128xf32> to vector<2x128xf32>
    %5 = arith.addf %2, %4 : vector<2x128xf32>
    %6 = math.tanh %5 : vector<2x128xf32>
    %c0_5 = arith.constant 0 : index
    %c0_6 = arith.constant 0 : index
    %7 = vector.load %arg5[%c0_5, %c0_6] : memref<2x128xf32, #tpu.memory_space<vmem>>, vector<2x128xf32>
    tpu.vector_store %arg5[%c0_5, %c0_6], %6 {strides = array<i32>} : memref<2x128xf32, #tpu.memory_space<vmem>>, vector<2x128xf32>,
    return
  }
  func.func @transform_0(%arg0: i32, %arg1: i32) -> (i32, i32) {
    %c0_i32 = arith.constant 0 : i32
    %c0_i32_0 = arith.constant 0 : i32
    return %arg0, %c0_i32 : i32, i32
  }
  func.func @transform_1(%arg0: i32, %arg1: i32) -> (i32, i32) {
    %c0_i32 = arith.constant 0 : i32
    %c0_i32_0 = arith.constant 0 : i32
    return %c0_i32, %arg1 : i32, i32
  }
  func.func @transform_2(%arg0: i32, %arg1: i32) -> (i32, i32) {
    %c0_i32 = arith.constant 0 : i32
    %c0_i32_0 = arith.constant 0 : i32
    return %c0_i32, %arg1 : i32, i32
  }
  func.func @transform_3(%arg0: i32, %arg1: i32) -> (i32, i32) {
    %c0_i32 = arith.constant 0 : i32
    return %arg0, %arg1 : i32, i32
  }
}

</mosaic_0001>

<llo_original>
// kernel: pooler_forward.1
$region0: #{pooler_forward.1}
  #allocation0 [shape = 'u32[]', space=smem, size = 0x4, offset = 0x4, fixed_abs, tag = 'smem constant byte address 0x4 - core index']
  #allocation1 [shape = 'u32[144,128]{1,0:T(1,128)}', space=vmem, size = 0x12000, scoped, tag = 'internal scratch']
  %s0 = inlined_call_operand.vmem [shape: bf16[2,128], index: 0, kind: input, shape index: {}]
  %s1 = inlined_call_operand.hbm [shape: bf16[128,128], index: 1, kind: input, shape index: {}]
  %s2 = inlined_call_operand.vmem [shape: f32[1,128], index: 2, kind: input, shape index: {}]
  %s3 = inlined_call_operand.hbm [shape: f32[2,128], index: 3, kind: output, shape index: {}]
  %s4 = sld [smem:[#allocation0]]
  $region26: #{pooler_forward.1} parent=0
    _
  %s6 = ssub.s32 1, %s4
  %s7 = scalar_select 0, %s6, %s4
  $region1: #{pooler_forward.1} parent=0
    #allocation2 [shape = 'u8[32768]{0}', space=vmem, size = 0x8000, scoped, tag = 'input window, operand 1, single buffered']
    #allocation3 [shape = 's32[1]{0}', space=sflag, size = 0x4, scoped, tag = 'scoped memory for pooler_forward.1']
    #allocation4 [shape = 's32[1]{0}', space=sflag, size = 0x4, scoped, tag = 'scoped memory for pooler_forward.1']
    #allocation5 [shape = 'u8[1024]{0}', space=vmem, size = 0x400, scoped, tag = 'output window, operand 0, single buffered']
    %8 = vsyncpa [#allocation3], 0
    %9 = vsyncpa [#allocation4], 0
    // Predicated region
    $region2: #{pooler_forward.1} parent=1 // pred_check
      _
    $region3: #{pooler_forward.1} parent=1 // pred_check_branch
      %11 = sbr.rel (0) target = $region5
    $region4: #{pooler_forward.1} parent=1 // pred_region
      _
    $region5: #{pooler_forward.1} parent=1 // pred_fallthru
      _
    // Predicated region
    $region6: #{pooler_forward.1} parent=1 // pred_check
      _
    $region7: #{pooler_forward.1} parent=1 // pred_check_branch
      %13 = sbr.rel (0) target = $region9
    $region8: #{pooler_forward.1} parent=1 // pred_region
      %s15 = ssub.s32 1024, 1024
      %16 = vsyncadd [#allocation3], %s15
      %s17 = sshll.u32 [#allocation2], 4
      %s18 = int_to_ptr.vmem [resolvable:$true] %s17
      %23 = dma.hbm_to_vmem [thread:$0]  %s1, 1024, %s18, [#allocation3], 64, 64, 4
    $region9: #{pooler_forward.1} parent=1 // pred_fallthru
      _
    // Predicated region
    $region10: #{pooler_forward.1} parent=1 // pred_check
      _
    $region11: #{pooler_forward.1} parent=1 // pred_check_branch
      %25 = sbr.rel (0) target = $region13
    $region12: #{pooler_forward.1} parent=1 // pred_region
      _
    $region13: #{pooler_forward.1} parent=1 // pred_fallthru
      _
    // Predicated region
    $region14: #{pooler_forward.1} parent=1 // pred_check
      _
    $region15: #{pooler_forward.1} parent=1 // pred_check_branch
      %27 = sbr.rel (0) target = $region17
    $region16: #{pooler_forward.1} parent=1 // pred_region
      %28 = dma.done [#allocation3], 1024
    $region17: #{pooler_forward.1} parent=1 // pred_fallthru
      _
    %v30 = vld [vmem:[%s0] sm:$0x1]
    %v31 = vld [vmem:[#allocation2] sm:$0xf]
    %v32 = vld [vmem:[#allocation2 + $0x4] sm:$0xf]
    %v33 = vld [vmem:[#allocation2 + $0x8] sm:$0xf]
    %v34 = vld [vmem:[#allocation2 + $0xc] sm:$0xf]
    %v35 = vld [vmem:[#allocation2 + $0x10] sm:$0xf]
    %v36 = vld [vmem:[#allocation2 + $0x14] sm:$0xf]
    %v37 = vld [vmem:[#allocation2 + $0x18] sm:$0xf]
    %v38 = vld [vmem:[#allocation2 + $0x1c] sm:$0xf]
    %v39 = vld [vmem:[#allocation2 + $0x20] sm:$0xf]
    %v40 = vld [vmem:[#allocation2 + $0x24] sm:$0xf]
    %v41 = vld [vmem:[#allocation2 + $0x28] sm:$0xf]
    %v42 = vld [vmem:[#allocation2 + $0x2c] sm:$0xf]
    %v43 = vld [vmem:[#allocation2 + $0x30] sm:$0xf]
    %v44 = vld [vmem:[#allocation2 + $0x34] sm:$0xf]
    %v45 = vld [vmem:[#allocation2 + $0x38] sm:$0xf]
    %v46 = vld [vmem:[#allocation2 + $0x3c] sm:$0xf]
    %v47 = vld [vmem:[%s2] sm:$0x1]
    %v49 = vlaneseq
    %v50 = vshrl.u32 %v49, 7
    %v51 = vsub.s32 0, %v50
    %v52 = vrot.slane %v47, %v51
    %v70 = vunpack.c.l.b16 %v31
    %v71 = vunpack.c.l.b16 %v32
    %v72 = vunpack.c.l.b16 %v33
    %v73 = vunpack.c.l.b16 %v34
    %v74 = vunpack.c.l.b16 %v35
    %v75 = vunpack.c.l.b16 %v36
    %v76 = vunpack.c.l.b16 %v37
    %v77 = vunpack.c.l.b16 %v38
    %v78 = vunpack.c.l.b16 %v39
    %v79 = vunpack.c.l.b16 %v40
    %v80 = vunpack.c.l.b16 %v41
    %v81 = vunpack.c.l.b16 %v42
    %v82 = vunpack.c.l.b16 %v43
    %v83 = vunpack.c.l.b16 %v44
    %v84 = vunpack.c.l.b16 %v45
    %v85 = vunpack.c.l.b16 %v46
    %v86 = vpack.c.b16 %v71, %v70
    %v87 = vpack.c.b16 %v73, %v72
    %v88 = vpack.c.b16 %v75, %v74
    %v89 = vpack.c.b16 %v77, %v76
    %v90 = vpack.c.b16 %v79, %v78
    %v91 = vpack.c.b16 %v81, %v80
    %v92 = vpack.c.b16 %v83, %v82
    %v93 = vpack.c.b16 %v85, %v84
    %102 = vmatprep.subr.bf16.mxu0 0
    %103 = vmatpush1.bf16.msra.mxu0 %v86
    %104 = vmatprep.subr.bf16.mxu0 0
    %105 = vmatpush1.bf16.msra.mxu0 %v87
    %106 = vmatprep.subr.bf16.mxu0 0
    %107 = vmatpush1.bf16.msra.mxu0 %v88
    %108 = vmatprep.subr.bf16.mxu0 0
    %109 = vmatpush1.bf16.msra.mxu0 %v89
    %110 = vmatprep.subr.bf16.mxu0 0
    %111 = vmatpush1.bf16.msra.mxu0 %v90
    %112 = vmatprep.subr.bf16.mxu0 0
    %113 = vmatpush1.bf16.msra.mxu0 %v91
    %114 = vmatprep.subr.bf16.mxu0 0
    %115 = vmatpush1.bf16.msra.mxu0 %v92
    %116 = vmatprep.subr.bf16.mxu0 0
    %117 = vmatpush1.bf16.msra.mxu0 %v93
    %118 = vmatprep.subr.bf16.mxu0 0
    %119 = vmatpush1.bf16.msra.mxu0 0
    %120 = vmatprep.subr.bf16.mxu0 0
    %121 = vmatpush1.bf16.msra.mxu0 0
    %122 = vmatprep.subr.bf16.mxu0 0
    %123 = vmatpush1.bf16.msra.mxu0 0
    %124 = vmatprep.subr.bf16.mxu0 0
    %125 = vmatpush1.bf16.msra.mxu0 0
    %126 = vmatprep.subr.bf16.mxu0 0
    %127 = vmatpush1.bf16.msra.mxu0 0
    %128 = vmatprep.subr.bf16.mxu0 0
    %129 = vmatpush1.bf16.msra.mxu0 0
    %130 = vmatprep.subr.bf16.mxu0 0
    %131 = vmatpush1.bf16.msra.mxu0 0
    %132 = vmatprep.subr.bf16.mxu0 0
    %133 = vmatpush1.bf16.msra.mxu0 0
    %134 = vmatprep.mubr.bf16.mxu0 0
    %135 = vmatmul.mubr.bf16.gmra.mrb[0].mxu0 %v30
    %v136 = vpop.f32.mrb[0].mxu0
    %v137 = vadd.f32 %v52, %v136
    %v138 = vpop.f32.mrb[0].mxu0
    %v139 = vpop.f32.mrb[0].mxu0
    %v140 = vpop.f32.mrb[0].mxu0
    %141 = vdwg.mxu0
    %v142 = vtanh.pop %v137
    %143 = vst [vmem:[#allocation5] sm:$0x3] %v142
    // Predicated region
    $region18: #{pooler_forward.1} parent=1 // pred_check
      _
    $region19: #{pooler_forward.1} parent=1 // pred_check_branch
      %145 = sbr.rel (0) target = $region21
    $region20: #{pooler_forward.1} parent=1 // pred_region
      %s147 = ssub.s32 32, 32
      %148 = vsyncadd [#allocation4], %s147
      %s150 = sshll.u32 [#allocation5], 4
      %s151 = int_to_ptr.vmem [resolvable:$true] %s150
      %153 = dma.vmem_to_hbm [thread:$0]  %s151, 32, %s3, [#allocation4]
    $region21: #{pooler_forward.1} parent=1 // pred_fallthru
      _
    // Predicated region
    $region22: #{pooler_forward.1} parent=1 // pred_check
      _
    $region23: #{pooler_forward.1} parent=1 // pred_check_branch
      %155 = sbr.rel (0) target = $region25
    $region24: #{pooler_forward.1} parent=1 // pred_region
      %156 = dma.done [#allocation4], 32
    $region25: #{pooler_forward.1} parent=1 // pred_fallthru
      _
    %157 = vsyncpa [#allocation3], 1
    %158 = vsyncpa [#allocation4], 1

</llo_original>
